<compile_context>
chip_gen: v5e
topology: v5e:2x2
jax: 0.10.0
libtpu: 0.0.40
codegen_flags: <defaults>
</compile_context>

<pallas_src>
import numpy as np
import jax
import jax.numpy as jnp
from jax import lax
from jax.experimental import pallas as pl
from jax.experimental.pallas import tpu as pltpu

EPS = 1e-8
REJECT_THRESHOLD = 1  # labels with count <= 1 are skipped


def _mr_loss_kernel(counts_ref, y_ref, x_ref, out_ref, loss_scr, cnt_scr):
    i = pl.program_id(0)
    n_labels = pl.num_programs(0)

    @pl.when(i == 0)
    def _():
        loss_scr[...] = jnp.zeros_like(loss_scr)
        cnt_scr[...] = jnp.zeros_like(cnt_scr)

    cnt_i = counts_ref[i]  # int32 scalar from SMEM (prefetched)

    @pl.when(cnt_i > REJECT_THRESHOLD)
    def _():
        cnt = cnt_i.astype(jnp.float32)          # >= 2 inside this branch
        inv_cnt = 1.0 / cnt
        inv_cnt_m1 = 1.0 / (cnt - 1.0)           # unbiased variance (torch default)

        x = x_ref[...]                                        # (N, C) f32
        maskc = (y_ref[...] == i).astype(jnp.float32)         # (N, 1) built in-kernel

        mean = jnp.sum(x * maskc, axis=0, keepdims=True) * inv_cnt      # (1, C)
        diff = (x - mean) * maskc                                       # masked rows -> 0
        ssq = jnp.sum(diff * diff, axis=0, keepdims=True)               # (1, C) = (cnt-1)*var
        inv_s = lax.rsqrt(EPS + ssq * inv_cnt_m1)                       # (1, C), EUP rsqrt
        xn = diff * inv_s                                               # (N, C)

        # corr = x_l^T @ x_l, contracting over the sample axis directly (no transpose)
        corr = lax.dot_general(
            xn, xn,
            dimension_numbers=(((0,), (0,)), ((), ())),
            preferred_element_type=jnp.float32,
        )                                                               # (C, C)

        # sum of squared off-diagonal = sum(corr^2) - sum(diag(corr)^2),
        # with diag(corr)[c] = ssq[c] * inv_s[c]^2 taken from the (1,C) row.
        total_sq = jnp.sum(corr * corr)
        diag = ssq * (inv_s * inv_s)                                    # (1, C)
        diag_sq = jnp.sum(diag * diag)

        C = x.shape[1]
        contrib = (total_sq - diag_sq) / float(C * (C - 1))             # mean over off-diag

        loss_scr[...] += contrib
        cnt_scr[...] += cnt

    @pl.when(i == n_labels - 1)
    def _():
        total_cnt = cnt_scr[...]                                        # (1, 1)
        loss_sum = loss_scr[...]                                        # (1, 1)
        out_ref[...] = jnp.where(
            total_cnt > 0.0,
            loss_sum / jnp.maximum(total_cnt, 1.0),
            jnp.zeros_like(loss_sum),
        )


def mr_loss(x, y, num_classes):
    """x: (N, C) float32, y: (N,) int labels in [0, num_classes)."""
    N, C = x.shape
    L = num_classes

    x = x.astype(jnp.float32)
    y = y.astype(jnp.int32)

    # Per-label counts (cheap segment-sum) -> scalar-prefetched into SMEM so the
    # kernel can skip rejected labels entirely.
    counts = jnp.zeros((L,), dtype=jnp.int32).at[y].add(1)
    y_col = y.reshape(N, 1)

    loss = pl.pallas_call(
        _mr_loss_kernel,
        out_shape=jax.ShapeDtypeStruct((1, 1), jnp.float32),
        grid_spec=pltpu.PrefetchScalarGridSpec(
            num_scalar_prefetch=1,               # counts -> SMEM
            grid=(L,),
            in_specs=[
                pl.BlockSpec((N, 1), lambda i, counts: (0, 0)),   # labels (constant block)
                pl.BlockSpec((N, C), lambda i, counts: (0, 0)),   # full x (constant block)
            ],
            out_specs=pl.BlockSpec((1, 1), lambda i, counts: (0, 0)),
            scratch_shapes=[
                pltpu.VMEM((1, 1), jnp.float32),   # running loss sum
                pltpu.VMEM((1, 1), jnp.float32),   # running sample count
            ],
        ),
        compiler_params=pltpu.CompilerParams(
            dimension_semantics=("arbitrary",),   # accumulators are resident across the grid
        ),
    )(counts, y_col, x)

    return loss[0, 0]


def _ref_mr_loss(x, y):
    """Pure numpy reference replicating the PyTorch module (float64)."""
    x = np.asarray(x, dtype=np.float64)
    y = np.asarray(y)
    loss = 0.0
    n_count = 0
    for label in np.unique(y):
        xl = x[y == label, :]
        Nl = xl.shape[0]
        if Nl <= REJECT_THRESHOLD:
            continue
        xl = xl - xl.mean(axis=0, keepdims=True)
        var = xl.var(axis=0, ddof=1, keepdims=True)
        xl = xl / np.sqrt(EPS + var)
        corr = xl.T @ xl
        Cc = corr.shape[0]
        off = corr[~np.eye(Cc, dtype=bool)]
        loss += float((off ** 2).mean())
        n_count += Nl
    if n_count == 0:
        return 0.0
    return loss / n_count


if __name__ == "__main__":
    key = jax.random.PRNGKey(0)
    kx, ky = jax.random.split(key)

    N, C, NUM_CLASSES = 32, 16, 4
    x = jax.random.normal(kx, (N, C), dtype=jnp.float32)
    y = jax.random.randint(ky, (N,), 0, NUM_CLASSES, dtype=jnp.int32)

    out = mr_loss(x, y, NUM_CLASSES)
    out = jax.block_until_ready(out)

    ref = _ref_mr_loss(np.array(x), np.array(y))
    np.testing.assert_allclose(float(out), ref, rtol=1e-3, atol=1e-4)

    print("KERNEL_OK")
</pallas_src>

<mosaic_0001>
module attributes {stable_mosaic.version = 11 : i64} {
  func.func @_mr_loss_kernel(%arg0: i32, %arg1: memref<4xi32, #tpu.memory_space<smem>>, %arg2: memref<32x1xi32, #tpu.memory_space<vmem>>, %arg3: memref<32x16xf32, #tpu.memory_space<vmem>>, %arg4: memref<1x1xf32, #tpu.memory_space<vmem>>, %arg5: memref<1x1xf32, #tpu.memory_space<vmem>>, %arg6: memref<1x1xf32, #tpu.memory_space<vmem>>) attributes {dimension_semantics = [#tpu.dimension_semantics<arbitrary>], iteration_bounds = array<i64: 4>, scalar_prefetch = 1 : i64, scratch_operands = 2 : i64, tpu.core_type = #tpu.core_type<tc>, window_params = [{pipeline_mode = #tpu.pipeline_mode<synchronous>, transform_indices = @transform_0, window_bounds = array<i64: 32, 1>}, {pipeline_mode = #tpu.pipeline_mode<synchronous>, transform_indices = @transform_1, window_bounds = array<i64: 32, 16>}, {pipeline_mode = #tpu.pipeline_mode<synchronous>, transform_indices = @transform_2, window_bounds = array<i64: 1, 1>}]} {
    %c0_i32 = arith.constant 0 : i32
    %0 = arith.cmpi eq, %arg0, %c0_i32 : i32
    %1 = arith.extui %0 : i1 to i32
    %c0_i32_0 = arith.constant 0 : i32
    %2 = arith.cmpi ne, %1, %c0_i32_0 : i32
    scf.if %2 {
      %cst = arith.constant 0.000000e+00 : f32
      %11 = vector.broadcast %cst : f32 to vector<1x1xf32>
      %c0 = arith.constant 0 : index
      %c0_3 = arith.constant 0 : index
      %12 = vector.load %arg5[%c0, %c0_3] : memref<1x1xf32, #tpu.memory_space<vmem>>, vector<1x1xf32>
      tpu.vector_store %arg5[%c0, %c0_3], %11 {strides = array<i32>} : memref<1x1xf32, #tpu.memory_space<vmem>>, vector<1x1xf32>,
      %cst_4 = arith.constant 0.000000e+00 : f32
      %13 = vector.broadcast %cst_4 : f32 to vector<1x1xf32>
      %c0_5 = arith.constant 0 : index
      %c0_6 = arith.constant 0 : index
      %14 = vector.load %arg6[%c0_5, %c0_6] : memref<1x1xf32, #tpu.memory_space<vmem>>, vector<1x1xf32>
      tpu.vector_store %arg6[%c0_5, %c0_6], %13 {strides = array<i32>} : memref<1x1xf32, #tpu.memory_space<vmem>>, vector<1x1xf32>,
    } else {
    }
    %3 = arith.index_cast %arg0 : i32 to index
    %4 = memref.load %arg1[%3] : memref<4xi32, #tpu.memory_space<smem>>
    %c1_i32 = arith.constant 1 : i32
    %5 = arith.cmpi sgt, %4, %c1_i32 : i32
    %6 = arith.extui %5 : i1 to i32
    %c0_i32_1 = arith.constant 0 : i32
    %7 = arith.cmpi ne, %6, %c0_i32_1 : i32
    scf.if %7 {
      %11 = arith.sitofp %4 : i32 to f32
      %cst = arith.constant 1.000000e+00 : f32
      %12 = arith.divf %cst, %11 : f32
      %cst_3 = arith.constant 1.000000e+00 : f32
      %13 = arith.subf %11, %cst_3 : f32
      %cst_4 = arith.constant 1.000000e+00 : f32
      %14 = arith.divf %cst_4, %13 : f32
      %c0 = arith.constant 0 : index
      %c0_5 = arith.constant 0 : index
      %15 = vector.load %arg3[%c0, %c0_5] : memref<32x16xf32, #tpu.memory_space<vmem>>, vector<32x16xf32>
      %c0_6 = arith.constant 0 : index
      %c0_7 = arith.constant 0 : index
      %16 = vector.load %arg2[%c0_6, %c0_7] : memref<32x1xi32, #tpu.memory_space<vmem>>, vector<32x1xi32>
      %17 = vector.broadcast %arg0 : i32 to vector<32x1xi32>
      %18 = arith.cmpi eq, %16, %17 : vector<32x1xi32>
      %19 = arith.extui %18 : vector<32x1xi1> to vector<32x1xi32>
      %20 = arith.sitofp %19 : vector<32x1xi32> to vector<32x1xf32>
      %21 = vector.broadcast %20 : vector<32x1xf32> to vector<32x16xf32>
      %22 = arith.mulf %15, %21 : vector<32x16xf32>
      %cst_8 = arith.constant dense<0.000000e+00> : vector<16xf32>
      %23 = vector.multi_reduction <add>, %22, %cst_8 [0] : vector<32x16xf32> to vector<16xf32>
      %24 = vector.shape_cast %23 : vector<16xf32> to vector<1x16xf32>
      %25 = vector.broadcast %12 : f32 to vector<1x16xf32>
      %26 = arith.mulf %24, %25 : vector<1x16xf32>
      %27 = vector.broadcast %26 : vector<1x16xf32> to vector<32x16xf32>
      %28 = arith.subf %15, %27 : vector<32x16xf32>
      %29 = vector.broadcast %20 : vector<32x1xf32> to vector<32x16xf32>
      %30 = arith.mulf %28, %29 : vector<32x16xf32>
      %31 = arith.mulf %30, %30 : vector<32x16xf32>
      %cst_9 = arith.constant dense<0.000000e+00> : vector<16xf32>
      %32 = vector.multi_reduction <add>, %31, %cst_9 [0] : vector<32x16xf32> to vector<16xf32>
      %33 = vector.shape_cast %32 : vector<16xf32> to vector<1x16xf32>
      %34 = vector.broadcast %14 : f32 to vector<1x16xf32>
      %35 = arith.mulf %33, %34 : vector<1x16xf32>
      %cst_10 = arith.constant 9.99999993E-9 : f32
      %36 = vector.broadcast %cst_10 : f32 to vector<1x16xf32>
      %37 = arith.addf %36, %35 : vector<1x16xf32>
      %38 = math.rsqrt %37 : vector<1x16xf32>
      %39 = vector.broadcast %38 : vector<1x16xf32> to vector<32x16xf32>
      %40 = arith.mulf %30, %39 : vector<32x16xf32>
      %cst_11 = arith.constant dense<0.000000e+00> : vector<16x16xf32>
      %41 = tpu.matmul %40, %40, %cst_11 {dimension_numbers = #tpu.dot_dimension_numbers<[0], [0], [1], [1], [0, 1, 1, 1], [], []>} : vector<32x16xf32>, vector<32x16xf32>, vector<16x16xf32> -> vector<16x16xf32>
      %42 = arith.mulf %41, %41 : vector<16x16xf32>
      %43 = vector.shape_cast %42 : vector<16x16xf32> to vector<1x16x16xf32>
      %cst_12 = arith.constant dense<0.000000e+00> : vector<1xf32>
      %44 = vector.multi_reduction <add>, %43, %cst_12 [1, 2] : vector<1x16x16xf32> to vector<1xf32>
      %45 = vector.shape_cast %44 : vector<1xf32> to vector<1x1x1xf32>
      %46 = vector.extract %45[0, 0, 0] : f32 from vector<1x1x1xf32>
      %47 = arith.mulf %38, %38 : vector<1x16xf32>
      %48 = arith.mulf %33, %47 : vector<1x16xf32>
      %49 = arith.mulf %48, %48 : vector<1x16xf32>
      %50 = vector.shape_cast %49 : vector<1x16xf32> to vector<1x1x16xf32>
      %cst_13 = arith.constant dense<0.000000e+00> : vector<1xf32>
      %51 = vector.multi_reduction <add>, %50, %cst_13 [1, 2] : vector<1x1x16xf32> to vector<1xf32>
      %52 = vector.shape_cast %51 : vector<1xf32> to vector<1x1x1xf32>
      %53 = vector.extract %52[0, 0, 0] : f32 from vector<1x1x1xf32>
      %54 = arith.subf %46, %53 : f32
      %cst_14 = arith.constant 2.400000e+02 : f32
      %55 = arith.divf %54, %cst_14 : f32
      %c0_15 = arith.constant 0 : index
      %c0_16 = arith.constant 0 : index
      %56 = vector.load %arg5[%c0_15, %c0_16] : memref<1x1xf32, #tpu.memory_space<vmem>>, vector<1x1xf32>
      %57 = vector.broadcast %55 : f32 to vector<1x1xf32>
      %58 = arith.addf %56, %57 : vector<1x1xf32>
      %c0_17 = arith.constant 0 : index
      %c0_18 = arith.constant 0 : index
      %59 = vector.load %arg5[%c0_17, %c0_18] : memref<1x1xf32, #tpu.memory_space<vmem>>, vector<1x1xf32>
      tpu.vector_store %arg5[%c0_17, %c0_18], %58 {strides = array<i32>} : memref<1x1xf32, #tpu.memory_space<vmem>>, vector<1x1xf32>,
      %c0_19 = arith.constant 0 : index
      %c0_20 = arith.constant 0 : index
      %60 = vector.load %arg6[%c0_19, %c0_20] : memref<1x1xf32, #tpu.memory_space<vmem>>, vector<1x1xf32>
      %61 = vector.broadcast %11 : f32 to vector<1x1xf32>
      %62 = arith.addf %60, %61 : vector<1x1xf32>
      %c0_21 = arith.constant 0 : index
      %c0_22 = arith.constant 0 : index
      %63 = vector.load %arg6[%c0_21, %c0_22] : memref<1x1xf32, #tpu.memory_space<vmem>>, vector<1x1xf32>
      tpu.vector_store %arg6[%c0_21, %c0_22], %62 {strides = array<i32>} : memref<1x1xf32, #tpu.memory_space<vmem>>, vector<1x1xf32>,
    } else {
    }
    %c3_i32 = arith.constant 3 : i32
    %8 = arith.cmpi eq, %arg0, %c3_i32 : i32
    %9 = arith.extui %8 : i1 to i32
    %c0_i32_2 = arith.constant 0 : i32
    %10 = arith.cmpi ne, %9, %c0_i32_2 : i32
    scf.if %10 {
      %c0 = arith.constant 0 : index
      %c0_3 = arith.constant 0 : index
      %11 = vector.load %arg6[%c0, %c0_3] : memref<1x1xf32, #tpu.memory_space<vmem>>, vector<1x1xf32>
      %c0_4 = arith.constant 0 : index
      %c0_5 = arith.constant 0 : index
      %12 = vector.load %arg5[%c0_4, %c0_5] : memref<1x1xf32, #tpu.memory_space<vmem>>, vector<1x1xf32>
      %cst = arith.constant 0.000000e+00 : f32
      %13 = vector.broadcast %cst : f32 to vector<1x1xf32>
      %14 = arith.cmpf ogt, %11, %13 : vector<1x1xf32>
      %cst_6 = arith.constant 1.000000e+00 : f32
      %15 = vector.broadcast %cst_6 : f32 to vector<1x1xf32>
      %16 = arith.maximumf %11, %15 : vector<1x1xf32>
      %17 = arith.divf %12, %16 : vector<1x1xf32>
      %cst_7 = arith.constant 0.000000e+00 : f32
      %18 = vector.broadcast %cst_7 : f32 to vector<1x1xf32>
      %19 = arith.select %14, %17, %18 : vector<1x1xi1>, vector<1x1xf32>
      %c0_8 = arith.constant 0 : index
      %c0_9 = arith.constant 0 : index
      %20 = vector.load %arg4[%c0_8, %c0_9] : memref<1x1xf32, #tpu.memory_space<vmem>>, vector<1x1xf32>
      tpu.vector_store %arg4[%c0_8, %c0_9], %19 {strides = array<i32>} : memref<1x1xf32, #tpu.memory_space<vmem>>, vector<1x1xf32>,
    } else {
    }
    return
  }
  func.func @transform_0(%arg0: i32, %arg1: memref<4xi32, #tpu.memory_space<smem>>) -> (i32, i32) {
    %c0_i32 = arith.constant 0 : i32
    %c0_i32_0 = arith.constant 0 : i32
    %c0_i32_1 = arith.constant 0 : i32
    return %c0_i32, %c0_i32_0 : i32, i32
  }
  func.func @transform_1(%arg0: i32, %arg1: memref<4xi32, #tpu.memory_space<smem>>) -> (i32, i32) {
    %c0_i32 = arith.constant 0 : i32
    %c0_i32_0 = arith.constant 0 : i32
    %c0_i32_1 = arith.constant 0 : i32
    return %c0_i32, %c0_i32_0 : i32, i32
  }
  func.func @transform_2(%arg0: i32, %arg1: memref<4xi32, #tpu.memory_space<smem>>) -> (i32, i32) {
    %c0_i32 = arith.constant 0 : i32
    %c0_i32_0 = arith.constant 0 : i32
    %c0_i32_1 = arith.constant 0 : i32
    return %c0_i32, %c0_i32_0 : i32, i32
  }
}

</mosaic_0001>

<llo_original>
// kernel: tpu_custom_call.1
$region0: #{tpu_custom_call.1}
  #allocation0 [shape = 'u32[]', space=smem, size = 0x4, offset = 0x4, fixed_abs, tag = 'smem constant byte address 0x4 - core index']
  #allocation1 [shape = 'u32[72,128]{1,0:T(1,128)}', space=vmem, size = 0x9000, scoped, tag = 'internal scratch']
  #allocation2 [shape = 'f32[1,1]{1,0:T(1,128)}', space=vmem, size = 0x200, scoped, tag = 'scratch operand']
  #allocation3 [shape = 'f32[1,1]{1,0:T(1,128)}', space=vmem, size = 0x200, scoped, tag = 'scratch operand']
  #allocation4 [shape = 's32[1]{0}', space=sflag, size = 0x4, scoped, tag = 'scoped memory for tpu_custom_call.1']
  #allocation5 [shape = 'u8[512]{0}', space=smem, size = 0x200, scoped, tag = 'prefetched SMEM operand 0']
  %s0 = inlined_call_operand.vmem [shape: s32[4], index: 0, kind: input, shape index: {}]
  %s1 = inlined_call_operand.vmem [shape: s32[32,1], index: 1, kind: input, shape index: {}]
  %s2 = inlined_call_operand.vmem [shape: f32[32,16], index: 2, kind: input, shape index: {}]
  %s3 = inlined_call_operand.hbm [shape: f32[1,1], index: 3, kind: output, shape index: {}]
  %s4 = sld [smem:[#allocation0]]
  $region53: #{tpu_custom_call.1} parent=0
    _
  %s6 = ssub.s32 1, %s4
  %s7 = scalar_select 0, %s6, %s4
  %s9 = sshll.u32 %s0, 4
  %s10 = int_to_ptr.vmem [resolvable:$true] %s9
  %12 = dma.vmem_to_smem %s10, 16, [#allocation5], [#allocation4]
  %14 = dma.done [#allocation4], 16
  %15 = sfence
  $region1: #{tpu_custom_call.1} parent=0
    #allocation6 [shape = 'u8[512]{0}', space=vmem, size = 0x400, scoped, tag = 'output window, operand 0, single buffered']
    #allocation7 [shape = 's32[2]{0}', space=sflag, size = 0x8, scoped, tag = 'scoped memory for tpu_custom_call.1']
    %16 = vsyncpa [#allocation7], 0
    loop: start=0, step=1, limit=6
    $region2: #{tpu_custom_call.1} parent=1 // loop_pre_header
      _
    $region3: #{tpu_custom_call.1} parent=1 // loop_header
      %s18 = sphi 0, %s22
      %p19 = scmp.ge.s32.totalorder %s18, 6
      %s26 = sphi 0, %s26
      %s28 = sphi 0, %s26
      %s29 = sphi 0, %s28
      %s43 = sphi 0, %s29
      %s47 = sphi 0, %s47
      %s49 = sphi 0, %s47
      %s50 = sphi 0, %s49
      %s64 = sphi 0, %s50
      %s68 = sphi 0, %s68
      %s70 = sphi 0, %s68
      %s71 = sphi 0, %s70
      %s85 = sphi 0, %s71
    $region4: #{tpu_custom_call.1} parent=1 // loop_header_branch
      %21 = sbr.rel (%p19) target = $region8
    $region5: #{tpu_custom_call.1} parent=1 // loop_body
      %s23 = ssub.s32 %s18, 1
      %s24 = ssub.s32 %s18, 2
      %s25 = sadd.s32 %s18, 1
      %s27 = sadd.s32 %s26, 1
      %p30 = scmp.eq.s32.totalorder %s18, 3
      %p31 = scmp.ne.s32.totalorder %s26, %s28
      %p32 = scmp.eq.s32.totalorder %s18, 0
      %p33 = por %p31, %p32
      %p34 = scmp.ne.s32.totalorder %s26, %s28
      %p35 = scmp.eq.s32.totalorder %s23, 3
      %p36 = por %p34, %p35
      %p37 = scmp.ne.s32.totalorder %s28, %s29
      %p38 = scmp.eq.s32.totalorder %s23, 0
      %p39 = por %p37, %p38
      %p40 = scmp.ne.s32.totalorder %s28, %s29
      %p41 = scmp.eq.s32.totalorder %s24, 3
      %p42 = por %p40, %p41
      %p44 = scmp.ne.s32.totalorder %s29, %s43
      %p45 = scmp.eq.s32.totalorder %s24, 0
      %p46 = por %p44, %p45
      %s48 = sadd.s32 %s47, 1
      %p51 = scmp.eq.s32.totalorder %s18, 3
      %p52 = scmp.ne.s32.totalorder %s47, %s49
      %p53 = scmp.eq.s32.totalorder %s18, 0
      %p54 = por %p52, %p53
      %p55 = scmp.ne.s32.totalorder %s47, %s49
      %p56 = scmp.eq.s32.totalorder %s23, 3
      %p57 = por %p55, %p56
      %p58 = scmp.ne.s32.totalorder %s49, %s50
      %p59 = scmp.eq.s32.totalorder %s23, 0
      %p60 = por %p58, %p59
      %p61 = scmp.ne.s32.totalorder %s49, %s50
      %p62 = scmp.eq.s32.totalorder %s24, 3
      %p63 = por %p61, %p62
      %p65 = scmp.ne.s32.totalorder %s50, %s64
      %p66 = scmp.eq.s32.totalorder %s24, 0
      %p67 = por %p65, %p66
      %s69 = sadd.s32 %s68, 1
      %p72 = scmp.eq.s32.totalorder %s18, 3
      %p73 = scmp.ne.s32.totalorder %s68, %s70
      %p74 = scmp.eq.s32.totalorder %s18, 0
      %p75 = por %p73, %p74
      %p76 = scmp.ne.s32.totalorder %s68, %s70
      %p77 = scmp.eq.s32.totalorder %s23, 3
      %p78 = por %p76, %p77
      %p79 = scmp.ne.s32.totalorder %s70, %s71
      %p80 = scmp.eq.s32.totalorder %s23, 0
      %p81 = por %p79, %p80
      %p82 = scmp.ne.s32.totalorder %s70, %s71
      %p83 = scmp.eq.s32.totalorder %s24, 3
      %p84 = por %p82, %p83
      %p86 = scmp.ne.s32.totalorder %s71, %s85
      %p87 = scmp.eq.s32.totalorder %s24, 0
      %p88 = por %p86, %p87
      %p89 = scmp.le.s32.totalorder 1, %s18
      %p90 = scmp.lt.s32.totalorder %s18, 5
      %p91 = pnand %p89, %p90
      %p92 = pneg %p91
      // Predicated region
      $region9: #{tpu_custom_call.1} parent=5 // pred_check
        _
      $region10: #{tpu_custom_call.1} parent=5 // pred_check_branch
        %94 = sbr.rel (%p91) target = $region12
      $region11: #{tpu_custom_call.1} parent=5 // pred_region
        %s95 = ssub.s32 %s18, 1
        // Predicated region
        $region13: #{tpu_custom_call.1} parent=11 // pred_check
          %p96 = pneg %p39
        $region14: #{tpu_custom_call.1} parent=11 // pred_check_branch
          %98 = sbr.rel (%p96) target = $region16
        $region15: #{tpu_custom_call.1} parent=11 // pred_region
          _
        $region16: #{tpu_custom_call.1} parent=11 // pred_fallthru
          _
        // Predicated region
        $region17: #{tpu_custom_call.1} parent=11 // pred_check
          %p99 = pneg %p60
        $region18: #{tpu_custom_call.1} parent=11 // pred_check_branch
          %101 = sbr.rel (%p99) target = $region20
        $region19: #{tpu_custom_call.1} parent=11 // pred_region
          _
        $region20: #{tpu_custom_call.1} parent=11 // pred_fallthru
          _
      $region12: #{tpu_custom_call.1} parent=5 // pred_fallthru
        _
      %p102 = scmp.lt.s32.totalorder %s18, 4
      // Predicated region
      $region21: #{tpu_custom_call.1} parent=5 // pred_check
        %p103 = pneg %p102
      $region22: #{tpu_custom_call.1} parent=5 // pred_check_branch
        %105 = sbr.rel (%p103) target = $region24
      $region23: #{tpu_custom_call.1} parent=5 // pred_region
        _
      $region24: #{tpu_custom_call.1} parent=5 // pred_fallthru
        _
      %p106 = scmp.le.s32.totalorder 1, %s18
      %p107 = scmp.lt.s32.totalorder %s18, 5
      %p108 = pnand %p106, %p107
      %p109 = pneg %p108
      // Predicated region
      $region25: #{tpu_custom_call.1} parent=5 // pred_check
        _
      $region26: #{tpu_custom_call.1} parent=5 // pred_check_branch
        %111 = sbr.rel (%p108) target = $region28
      $region27: #{tpu_custom_call.1} parent=5 // pred_region
        %s112 = ssub.s32 %s18, 1
        %p113 = pneg %p39
        %p114 = pneg %p36
        %p115 = pneg %p60
        %p116 = pneg %p57
        %p117 = pneg %p81
        %p118 = pneg %p78
        %p119 = scmp.eq.s32.totalorder %s23, 0
        // Predicated region
        $region29: #{tpu_custom_call.1} parent=27 // pred_check
          %p120 = pneg %p119
        $region30: #{tpu_custom_call.1} parent=27 // pred_check_branch
          %122 = sbr.rel (%p120) target = $region32
        $region31: #{tpu_custom_call.1} parent=27 // pred_region
          %vm123 = vcmask 0
          %124 = vst.msk [vmem:[#allocation2] sm:$0x1] %vm123, 0.0
          %125 = vst.msk [vmem:[#allocation3] sm:$0x1] %vm123, 0.0
        $region32: #{tpu_custom_call.1} parent=27 // pred_fallthru
          _
        %s126 = sld [smem:[#allocation5 + %s23]]
        %p127 = scmp.gt.s32.totalorder %s126, 1
        // Predicated region
        $region33: #{tpu_custom_call.1} parent=27 // pred_check
          %p128 = pneg %p127
        $region34: #{tpu_custom_call.1} parent=27 // pred_check_branch
          %130 = sbr.rel (%p128) target = $region36
        $region35: #{tpu_custom_call.1} parent=27 // pred_region
          %s131 = scvt.s32.f32 %s126
          %v132 = vstv %s131
          %v133 = vrcp.pop %v132
          %v134 = vmul.f32 %v132, %v133
          %v135 = vsub.f32 1.0, %v134
          %v136 = vmul.f32 %v133, %v135
          %v137 = vadd.f32 %v133, %v136
          %vm138 = vweird.f32 %v132
          %vm139 = vweird.f32 %v133
          %vm140 = vmor %vm138, %vm139
          %v141 = vsel %vm140, %v133, %v137
          %v142 = vand.u32 2147483647, %v132
          %vm143 = vcmp.eq.f32.partialorder %v142, 8.507059e+37
          %v144 = vand.u32 %v132, 2147483648
          %v145 = vor.u32 1.1754944e-38, %v144
          %v146 = vsel %vm143, %v145, %v141
          %s147 = vtos %v146
          %s148 = ssub.f32 %s131, 1.0
          %v149 = vstv %s148
          %v150 = vrcp.pop %v149
          %v151 = vmul.f32 %v149, %v150
          %v152 = vsub.f32 1.0, %v151
          %v153 = vmul.f32 %v150, %v152
          %v154 = vadd.f32 %v150, %v153
          %vm155 = vweird.f32 %v149
          %vm156 = vweird.f32 %v150
          %vm157 = vmor %vm155, %vm156
          %v158 = vsel %vm157, %v150, %v154
          %v159 = vand.u32 2147483647, %v149
          %vm160 = vcmp.eq.f32.partialorder %v159, 8.507059e+37
          %v161 = vand.u32 %v149, 2147483648
          %v162 = vor.u32 1.1754944e-38, %v161
          %v163 = vsel %vm160, %v162, %v158
          %s164 = vtos %v163
          %v165 = vld [vmem:[%s2] sm:$0xff]
          %v166 = vld [vmem:[%s2 + $0x8] sm:$0xff]
          %v167 = vld [vmem:[%s2 + $0x10] sm:$0xff]
          %v168 = vld [vmem:[%s2 + $0x18] sm:$0xff]
          %v169 = vld [vmem:[%s1] sm:$0xff]
          %v170 = vld [vmem:[%s1 + $0x8] sm:$0xff]
          %v171 = vld [vmem:[%s1 + $0x10] sm:$0xff]
          %v172 = vld [vmem:[%s1 + $0x18] sm:$0xff]
          %v173 = vstv %s23
          %vm174 = vcmp.eq.s32.totalorder %v169, %v173
          %vm175 = vcmp.eq.s32.totalorder %v170, %v173
          %vm176 = vcmp.eq.s32.totalorder %v171, %v173
          %vm177 = vcmp.eq.s32.totalorder %v172, %v173
          %v178 = vsel %vm174, 1, 0
          %v179 = vsel %vm175, 1, 0
          %v180 = vsel %vm176, 1, 0
          %v181 = vsel %vm177, 1, 0
          %v182 = vcvt.s32.f32 %v178
          %v183 = vcvt.s32.f32 %v179
          %v184 = vcvt.s32.f32 %v180
          %v185 = vcvt.s32.f32 %v181
          %187 = vset.pattern.permute.xlu0 0
          %188 = vperm.xlu0 %187, %v182
          %v189 = vpop.permute.xlu0 %188
          %192 = vset.pattern.permute.xlu0 0
          %193 = vperm.xlu0 %192, %v183
          %v194 = vpop.permute.xlu0 %193
          %197 = vset.pattern.permute.xlu0 0
          %198 = vperm.xlu0 %197, %v184
          %v199 = vpop.permute.xlu0 %198
          %202 = vset.pattern.permute.xlu0 0
          %203 = vperm.xlu0 %202, %v185
          %v204 = vpop.permute.xlu0 %203
          %v206 = vmul.f32 %v165, %v189
          %v207 = vmul.f32 %v166, %v194
          %v208 = vmul.f32 %v167, %v199
          %v209 = vmul.f32 %v168, %v204
          %vm210 = vcmask 130048
          %v211 = vsel %vm210, %v206, 0.0
          %v212 = vsel %vm210, %v207, 0.0
          %v213 = vadd.f32 %v211, %v212
          %v214 = vsel %vm210, %v208, 0.0
          %v215 = vadd.f32 %v213, %v214
          %v216 = vsel %vm210, %v209, 0.0
          %v217 = vadd.f32 %v215, %v216
          %v218 = vrot.slane %v217, 4
          %v219 = vadd.f32 %v217, %v218
          %v220 = vrot.slane %v219, 2
          %v221 = vadd.f32 %v219, %v220
          %v222 = vrot.slane %v221, 1
          %v223 = vadd.f32 %v221, %v222
          %v224 = vstv %s147
          %v225 = vmul.f32 %v223, %v224
          %v226 = vsub.f32 %v165, %v225
          %v227 = vsub.f32 %v166, %v225
          %v228 = vsub.f32 %v167, %v225
          %v229 = vsub.f32 %v168, %v225
          %v230 = vmul.f32 %v226, %v189
          %v231 = vmul.f32 %v227, %v194
          %v232 = vmul.f32 %v228, %v199
          %v233 = vmul.f32 %v229, %v204
          %v234 = vmul.f32 %v230, %v230
          %v235 = vmul.f32 %v231, %v231
          %v236 = vmul.f32 %v232, %v232
          %v237 = vmul.f32 %v233, %v233
          %v238 = vsel %vm210, %v234, 0.0
          %v239 = vsel %vm210, %v235, 0.0
          %v240 = vadd.f32 %v238, %v239
          %v241 = vsel %vm210, %v236, 0.0
          %v242 = vadd.f32 %v240, %v241
          %v243 = vsel %vm210, %v237, 0.0
          %v244 = vadd.f32 %v242, %v243
          %v245 = vrot.slane %v244, 4
          %v246 = vadd.f32 %v244, %v245
          %v247 = vrot.slane %v246, 2
          %v248 = vadd.f32 %v246, %v247
          %v249 = vrot.slane %v248, 1
          %v250 = vadd.f32 %v248, %v249
          %v251 = vstv %s164
          %v252 = vmul.f32 %v250, %v251
          %v253 = vadd.f32 %v252, 1e-08
          %v254 = vrsqrt.pop %v253
          %v255 = vmul.f32 %v254, %v253
          %v256 = vmul.f32 %v255, %v254
          %v257 = vmul.f32 0.5, %v256
          %v258 = vsub.f32 1.5, %v257
          %v259 = vmul.f32 %v254, %v258
          %vm260 = vweird.f32 %v253
          %vm261 = vweird.f32 %v254
          %vm262 = vmor %vm260, %vm261
          %v263 = vsel %vm262, %v254, %v259
          %v264 = vmul.f32 %v230, %v263
          %v265 = vmul.f32 %v231, %v263
          %v266 = vmul.f32 %v232, %v263
          %v267 = vmul.f32 %v233, %v263
          %268 = vxpose.xlu0.b32.start [1/16] %v264, 128
          %269 = vxpose.xlu0.b32.cont [2/16] %v265, 128
          %270 = vxpose.xlu0.b32.cont [3/16] %v266, 128
          %271 = vxpose.xlu0.b32.cont [4/16] %v267, 128
          %272 = vxpose.xlu0.b32.cont [5/16] 0.0, 128
          %273 = vxpose.xlu0.b32.cont [6/16] 0.0, 128
          %274 = vxpose.xlu0.b32.cont [7/16] 0.0, 128
          %275 = vxpose.xlu0.b32.cont [8/16] 0.0, 128
          %276 = vxpose.xlu0.b32.cont [9/16] 0.0, 128
          %277 = vxpose.xlu0.b32.cont [10/16] 0.0, 128
          %278 = vxpose.xlu0.b32.cont [11/16] 0.0, 128
          %279 = vxpose.xlu0.b32.cont [12/16] 0.0, 128
          %280 = vxpose.xlu0.b32.cont [13/16] 0.0, 128
          %281 = vxpose.xlu0.b32.cont [14/16] 0.0, 128
          %282 = vxpose.xlu0.b32.cont [15/16] 0.0, 128
          %283 = vxpose.xlu0.b32.end [16/16] 0.0, 128
          %v284 = vpop.trf.xlu0
          %v285 = vpop.trf.xlu0
          %v286 = vpop.trf.xlu0
          %v287 = vpop.trf.xlu0
          %v288 = vpop.trf.xlu0
          %v289 = vpop.trf.xlu0
          %v290 = vpop.trf.xlu0
          %v291 = vpop.trf.xlu0
          %v292 = vpop.trf.xlu0
          %v293 = vpop.trf.xlu0
          %v294 = vpop.trf.xlu0
          %v295 = vpop.trf.xlu0
          %v296 = vpop.trf.xlu0
          %v297 = vpop.trf.xlu0
          %v298 = vpop.trf.xlu0
          %v299 = vpop.trf.xlu0
          %vm300 = vcmask 261120
          %v302 = vsel %vm300, %v284, 0
          %v305 = vsel %vm300, %v285, 0
          %307 = vmatpush.msra.mxu0 0.0
          %308 = vmatpush.msra.mxu0 0.0
          %309 = vmatpush.msra.mxu0 0.0
          %310 = vmatpush.msra.mxu0 0.0
          %311 = vmatpush.msra.mxu0 0.0
          %312 = vmatpush.msra.mxu0 0.0
          %313 = vmatpush.msra.mxu0 0.0
          %314 = vmatpush.msra.mxu0 0.0
          %315 = vmatpush.msra.mxu0 0.0
          %316 = vmatpush.msra.mxu0 0.0
          %317 = vmatpush.msra.mxu0 0.0
          %318 = vmatpush.msra.mxu0 0.0
          %319 = vmatpush.msra.mxu0 %v267
          %320 = vmatpush.msra.mxu0 %v266
          %321 = vmatpush.msra.mxu0 %v265
          %322 = vmatpush.msra.mxu0 %v264
          %323 = vmatmul.f32.gmra.mxu0 %v302
          %v324 = vpop.f32.mrf.mxu0
          %v325 = vadd.f32 0.0, %v324
          %326 = vmatmul.f32.gmra.mxu0 %v305
          %v327 = vpop.f32.mrf.mxu0
          %v328 = vadd.f32 0.0, %v327
          %329 = vdwg.mxu0
          %v330 = vmul.f32 %v325, %v325
          %v331 = vmul.f32 %v328, %v328
          %v332 = vsel %vm210, %v330, 0.0
          %v333 = vsel %vm210, %v331, 0.0
          %v334 = vadd.f32 %v332, %v333
          %335 = vadd.xlane.f32.xlu0 %v334
          %v336 = vpop.xlane.xlu0 %335
          %v337 = vrot.slane %v336, 4
          %v338 = vadd.f32 %v336, %v337
          %v339 = vrot.slane %v338, 2
          %v340 = vadd.f32 %v338, %v339
          %v341 = vrot.slane %v340, 1
          %v342 = vadd.f32 %v340, %v341
          %s343 = vtos %v342
          %v344 = vmul.f32 %v263, %v263
          %v345 = vmul.f32 %v250, %v344
          %v346 = vmul.f32 %v345, %v345
          %vm347 = vcmask 122880
          %v348 = vsel %vm347, %v346, 0.0
          %349 = vadd.xlane.f32.xlu0 %v348
          %v350 = vpop.xlane.xlu0 %349
          %v351 = vrot.slane %v350, 4
          %v352 = vadd.f32 %v350, %v351
          %v353 = vrot.slane %v352, 2
          %v354 = vadd.f32 %v352, %v353
          %v355 = vrot.slane %v354, 1
          %v356 = vadd.f32 %v354, %v355
          %s357 = vtos %v356
          %s358 = ssub.f32 %s343, %s357
          %v359 = vrcp.pop 240.0
          %v360 = vmul.f32 240.0, %v359
          %v361 = vsub.f32 1.0, %v360
          %v362 = vmul.f32 %v359, %v361
          %v363 = vadd.f32 %v359, %v362
          %vm364 = vweird.f32 %v359
          %v365 = vsel %vm364, %v359, %v363
          %s366 = vtos %v365
          %s367 = smul.f32 %s358, %s366
          %v368 = vld [vmem:[#allocation2] sm:$0x1]
          %v369 = vstv %s367
          %v370 = vadd.f32 %v368, %v369
          %vm371 = vcmask 0
          %372 = vst.msk [vmem:[#allocation2] sm:$0x1] %vm371, %v370
          %v373 = vld [vmem:[#allocation3] sm:$0x1]
          %v374 = vstv %s131
          %v375 = vadd.f32 %v373, %v374
          %376 = vst.msk [vmem:[#allocation3] sm:$0x1] %vm371, %v375
        $region36: #{tpu_custom_call.1} parent=27 // pred_fallthru
          _
        %p377 = scmp.eq.s32.totalorder %s23, 3
        // Predicated region
        $region37: #{tpu_custom_call.1} parent=27 // pred_check
          %p378 = pneg %p377
        $region38: #{tpu_custom_call.1} parent=27 // pred_check_branch
          %380 = sbr.rel (%p378) target = $region40
        $region39: #{tpu_custom_call.1} parent=27 // pred_region
          %v381 = vld [vmem:[#allocation3] sm:$0x1]
          %v382 = vld [vmem:[#allocation2] sm:$0x1]
          %vm383 = vcmp.gt.f32.partialorder %v381, 0.0
          %v384 = vmax.f32 %v381, 1.0
          %v385 = vrcp.pop %v384
          %v386 = vmul.f32 %v384, %v385
          %v387 = vsub.f32 1.0, %v386
          %v388 = vmul.f32 %v385, %v387
          %v389 = vadd.f32 %v385, %v388
          %vm390 = vweird.f32 %v384
          %vm391 = vweird.f32 %v385
          %vm392 = vmor %vm390, %vm391
          %v393 = vsel %vm392, %v385, %v389
          %v394 = vand.u32 2147483647, %v384
          %vm395 = vcmp.eq.f32.partialorder %v394, 8.507059e+37
          %v396 = vand.u32 %v384, 2147483648
          %v397 = vor.u32 1.1754944e-38, %v396
          %v398 = vsel %vm395, %v397, %v393
          %v399 = vmul.f32 %v382, %v398
          %v400 = vsel %vm383, %v399, 0.0
          %vm401 = vcmask 0
          %402 = vst.msk [vmem:[#allocation6] sm:$0x1] %vm401, %v400
        $region40: #{tpu_custom_call.1} parent=27 // pred_fallthru
          _
        // Predicated region
        $region41: #{tpu_custom_call.1} parent=27 // pred_check
          %p403 = pneg %p78
        $region42: #{tpu_custom_call.1} parent=27 // pred_check_branch
          %405 = sbr.rel (%p403) target = $region44
        $region43: #{tpu_custom_call.1} parent=27 // pred_region
          %407 = vsyncadd [#allocation7], 0
          %s409 = sshll.u32 [#allocation6], 4
          %s410 = int_to_ptr.vmem [resolvable:$true] %s409
          %s411 = sshll.u32 %s3, 4
          %s412 = int_to_ptr.hbm [resolvable:$true] %s411
          %414 = dma.vmem_to_hbm [thread:$0]  %s410, 16, %s412, [#allocation7]
        $region44: #{tpu_custom_call.1} parent=27 // pred_fallthru
          _
        // Predicated region
        $region45: #{tpu_custom_call.1} parent=27 // pred_check
          %p415 = pneg %p78
        $region46: #{tpu_custom_call.1} parent=27 // pred_check_branch
          %417 = sbr.rel (%p415) target = $region48
        $region47: #{tpu_custom_call.1} parent=27 // pred_region
          %419 = dma.done [#allocation7], 16
        $region48: #{tpu_custom_call.1} parent=27 // pred_fallthru
          _
      $region28: #{tpu_custom_call.1} parent=5 // pred_fallthru
        _
      %p420 = scmp.le.s32.totalorder 2, %s18
      // Predicated region
      $region49: #{tpu_custom_call.1} parent=5 // pred_check
        %p421 = pneg %p420
      $region50: #{tpu_custom_call.1} parent=5 // pred_check_branch
        %423 = sbr.rel (%p421) target = $region52
      $region51: #{tpu_custom_call.1} parent=5 // pred_region
        %s424 = ssub.s32 %s18, 2
      $region52: #{tpu_custom_call.1} parent=5 // pred_fallthru
        _
    $region6: #{tpu_custom_call.1} parent=1 // loop_footer
      %s22 = sadd.s32 1, %s18
    $region7: #{tpu_custom_call.1} parent=1 // loop_footer_branch
      %17 = sbr.rel target = $region3
    $region8: #{tpu_custom_call.1} parent=1 // loop_exit
      _
    %425 = vsyncpa [#allocation7], 1
    %s426 = scalar_lea.sflag [#allocation7], 1
    %427 = vsyncpa %s426, 1

</llo_original>
